<compile_context>
chip_gen: v7x
topology: tpu7x:2x2x1
jax: 0.10.0
libtpu: 0.0.40
codegen_flags: <defaults>
</compile_context>

<pallas_src>
import functools

import jax
import jax.numpy as jnp
from jax.experimental import pallas as pl
from jax.experimental.pallas import tpu as pltpu


def _round_up(x, m):
    return (x + m - 1) // m * m


def actor_mlp_kernel(x_ref, w_ref, b_ref, probs_ref, *, d_in, d_pad, h, n_actions):
    """Fused 3-layer MLP + softmax on one batch tile.

    x_ref:     (TB, d_in)         f32 state tile (pipelined over the batch grid)
    w_ref:     (d_pad + 2*h, h)   bf16 packed [W1; W2; W3] (VMEM-resident)
    b_ref:     (3, h)             f32 packed biases (padded b3 lanes = -1e30)
    probs_ref: (TB, n_actions)    f32 probabilities (narrow writeback)
    """
    # Cast the f32 state tile to bf16 on the VPU (no wrapper-side prepass).
    x = x_ref[...].astype(jnp.bfloat16)

    # Static views of the packed weight slab (d_pad multiple of 16 keeps the
    # W2/W3 row slices bf16-sublane aligned).
    w1 = w_ref[0:d_in, :]                     # (d_in, h)
    w2 = w_ref[d_pad:d_pad + h, :]            # (h, h)
    w3 = w_ref[d_pad + h:d_pad + 2 * h, :]    # (h, h)

    # fc1 + ReLU  (bf16 MXU operands, f32 accumulate / elementwise).
    h1 = jnp.dot(x, w1, preferred_element_type=jnp.float32)
    h1 = jnp.maximum(h1 + b_ref[0:1, :], 0.0)

    # fc2 + ReLU
    h2 = jnp.dot(h1.astype(jnp.bfloat16), w2, preferred_element_type=jnp.float32)
    h2 = jnp.maximum(h2 + b_ref[1:2, :], 0.0)

    # fc3 logits. Padded action lanes carry bias -1e30 so their exp underflows
    # to exactly 0. NOTE: this trick requires f32 logits and exactly-zero
    # padded W3 columns (both guaranteed by pack_params).
    logits = jnp.dot(h2.astype(jnp.bfloat16), w3, preferred_element_type=jnp.float32)
    logits = logits + b_ref[2:3, :]

    # Numerically stable softmax over the lane-dense 128-wide logits; store
    # only the real action lanes (narrow HBM writeback). Exact f32 divide so
    # each row sums to 1 within f32 rounding.
    m = jnp.max(logits, axis=-1, keepdims=True)
    e = jnp.exp(logits - m)
    denom = jnp.sum(e, axis=-1, keepdims=True)
    probs_ref[...] = (e[:, :n_actions] / denom).astype(probs_ref.dtype)


def pack_params(params, *, h=128):
    """Pack params into one bf16 weight slab + one f32 bias slab.

    Call once per parameter update (NOT per forward) — the pad/concat/cast are
    XLA ops that should stay out of the per-step hot path.
    """
    w1, b1, w2, b2, w3, b3 = params
    d_in, fc1 = w1.shape
    fc2 = w2.shape[1]
    n_actions = w3.shape[1]
    assert max(fc1, fc2, n_actions) <= h, "hidden/action dims must fit in one lane tile"
    d_pad = _round_up(d_in, 16)  # bf16 sublane-group alignment for the row slices

    def pad2d(a, rows, cols, fill=0.0):
        return jnp.pad(a, ((0, rows - a.shape[0]), (0, cols - a.shape[1])),
                       constant_values=fill)

    w_packed = jnp.concatenate(
        [pad2d(w1, d_pad, h), pad2d(w2, h, h), pad2d(w3, h, h)], axis=0
    ).astype(jnp.bfloat16)

    b_packed = jnp.concatenate(
        [pad2d(b1.reshape(1, -1), 1, h),
         pad2d(b2.reshape(1, -1), 1, h),
         # Huge negative bias on padded action lanes -> softmax prob exactly 0.
         pad2d(b3.reshape(1, -1), 1, h, fill=-1e30)], axis=0
    ).astype(jnp.float32)

    return w_packed, b_packed, d_pad, n_actions


def _choose_batch_tile(batch, batch_tile, min_grid_steps=2):
    """Adaptive tile: big enough to amortize per-step overhead, but split into
    >= min_grid_steps balanced tiles (v7x megacore) when the batch allows."""
    tb = min(batch_tile, _round_up(pl.cdiv(batch, min_grid_steps), 8))
    return max(tb, 8)


def actor_forward(state, w_packed, b_packed, d_pad, n_actions,
                  *, batch_tile=2048, h=128):
    """Batch-gridded fused actor MLP + softmax. Returns [batch, n_actions] probs."""
    batch, d_in = state.shape
    tb = _choose_batch_tile(batch, batch_tile)
    grid = (pl.cdiv(batch, tb),)  # ragged last tile masked by Pallas; no jnp.pad

    kernel = functools.partial(actor_mlp_kernel, d_in=d_in, d_pad=d_pad, h=h,
                               n_actions=n_actions)

    return pl.pallas_call(
        kernel,
        out_shape=jax.ShapeDtypeStruct((batch, n_actions), jnp.float32),
        grid=grid,
        in_specs=[
            pl.BlockSpec((tb, d_in), lambda i: (i, 0)),           # f32 state tile
            pl.BlockSpec((d_pad + 2 * h, h), lambda i: (0, 0)),   # resident weights
            pl.BlockSpec((3, h), lambda i: (0, 0)),               # resident biases
        ],
        out_specs=pl.BlockSpec((tb, n_actions), lambda i: (i, 0)),  # narrow output
        compiler_params=pltpu.CompilerParams(
            dimension_semantics=("parallel",)),                   # megacore on v7x
    )(state, w_packed, b_packed)


def init_params(key, input_dims, fc1_dims, fc2_dims, n_actions):
    """Deterministic init mimicking nn.Linear's U(-1/sqrt(fan_in), +1/sqrt(fan_in))."""
    def linear(key, fan_in, fan_out):
        kw, kb = jax.random.split(key)
        bound = 1.0 / jnp.sqrt(fan_in)
        w = jax.random.uniform(kw, (fan_in, fan_out), jnp.float32,
                               minval=-bound, maxval=bound)
        b = jax.random.uniform(kb, (1, fan_out), jnp.float32,
                               minval=-bound, maxval=bound)
        return w, b

    k1, k2, k3 = jax.random.split(key, 3)
    w1, b1 = linear(k1, input_dims, fc1_dims)
    w2, b2 = linear(k2, fc1_dims, fc2_dims)
    w3, b3 = linear(k3, fc2_dims, n_actions)
    return (w1, b1, w2, b2, w3, b3)


def actor_forward_ref(state, params):
    """Pure-JAX f32 reference for the correctness check."""
    w1, b1, w2, b2, w3, b3 = params
    h1 = jnp.maximum(state @ w1 + b1, 0.0)
    h2 = jnp.maximum(h1 @ w2 + b2, 0.0)
    logits = h2 @ w3 + b3
    return jax.nn.softmax(logits, axis=-1)


if __name__ == "__main__":
    # Module-consistent shapes: input_dims=(16,), fc1=fc2=32, n_actions=4.
    batch = 8
    input_dims = 16
    fc1_dims = 32
    fc2_dims = 32
    n_actions = 4

    key = jax.random.PRNGKey(0)
    k_params, k_state, k_big = jax.random.split(key, 3)

    params = init_params(k_params, input_dims, fc1_dims, fc2_dims, n_actions)

    # Pack the parameter slabs ONCE (per PPO update) — hoisted out of the
    # per-step forward path.
    w_packed, b_packed, d_pad, n_act = pack_params(params)
    (w_packed, b_packed) = jax.block_until_ready((w_packed, b_packed))

    # Small (online action-selection sized) batch: single grid step.
    state = jax.random.normal(k_state, (batch, input_dims), jnp.float32)
    probs = jax.block_until_ready(
        actor_forward(state, w_packed, b_packed, d_pad, n_act))
    ref = actor_forward_ref(state, params)
    assert probs.shape == (batch, n_actions)
    # bf16 MXU operands -> loosened per-element tolerance vs the f32 reference.
    assert jnp.allclose(probs, ref, atol=2e-2, rtol=2e-2)
    # Exact f32 divide in the softmax epilogue -> rows sum to 1 tightly.
    assert jnp.allclose(jnp.sum(probs, axis=-1), 1.0, atol=1e-5)

    # Rollout-sized batch: 520 rows -> tb=264 -> 2 balanced "parallel" grid
    # steps (v7x uses both TensorCores), last tile ragged-masked by Pallas.
    big_state = jax.random.normal(k_big, (520, input_dims), jnp.float32)
    big_probs = jax.block_until_ready(
        actor_forward(big_state, w_packed, b_packed, d_pad, n_act))
    big_ref = actor_forward_ref(big_state, params)
    assert big_probs.shape == (520, n_actions)
    assert jnp.allclose(big_probs, big_ref, atol=2e-2, rtol=2e-2)
    assert jnp.allclose(jnp.sum(big_probs, axis=-1), 1.0, atol=1e-5)

    # TODO(synk): torch.distributions.Categorical object construction has no
    # Pallas equivalent; the kernel returns its probability matrix instead.
    print("KERNEL_OK")
</pallas_src>

<mosaic_0001>
module attributes {stable_mosaic.version = 11 : i64} {
  func.func @actor_mlp_kernel(%arg0: i32, %arg1: memref<8x16xf32, #tpu.memory_space<vmem>>, %arg2: memref<272x128xbf16, #tpu.memory_space<vmem>>, %arg3: memref<3x128xf32, #tpu.memory_space<vmem>>, %arg4: memref<8x4xf32, #tpu.memory_space<vmem>>) attributes {dimension_semantics = [#tpu.dimension_semantics<parallel>], iteration_bounds = array<i64: 1>, scalar_prefetch = 0 : i64, scratch_operands = 0 : i64, tpu.core_type = #tpu.core_type<tc>, window_params = [{transform_indices = @transform_0, window_bounds = array<i64: 8, 16>}, {pipeline_mode = #tpu.pipeline_mode<synchronous>, transform_indices = @transform_1, window_bounds = array<i64: 272, 128>}, {pipeline_mode = #tpu.pipeline_mode<synchronous>, transform_indices = @transform_2, window_bounds = array<i64: 3, 128>}, {transform_indices = @transform_3, window_bounds = array<i64: 8, 4>}]} {
    %c0 = arith.constant 0 : index
    %c0_0 = arith.constant 0 : index
    %0 = vector.load %arg1[%c0, %c0_0] : memref<8x16xf32, #tpu.memory_space<vmem>>, vector<8x16xf32>
    %1 = arith.truncf %0 : vector<8x16xf32> to vector<8x16xbf16>
    %c0_1 = arith.constant 0 : index
    %c0_2 = arith.constant 0 : index
    %2 = vector.load %arg2[%c0_1, %c0_2] : memref<272x128xbf16, #tpu.memory_space<vmem>>, vector<16x128xbf16>
    %c16 = arith.constant 16 : index
    %c0_3 = arith.constant 0 : index
    %3 = vector.load %arg2[%c16, %c0_3] : memref<272x128xbf16, #tpu.memory_space<vmem>>, vector<128x128xbf16>
    %c144 = arith.constant 144 : index
    %c0_4 = arith.constant 0 : index
    %4 = vector.load %arg2[%c144, %c0_4] : memref<272x128xbf16, #tpu.memory_space<vmem>>, vector<128x128xbf16>
    %cst = arith.constant dense<0.000000e+00> : vector<8x128xf32>
    %5 = tpu.matmul %1, %2, %cst {dimension_numbers = #tpu.dot_dimension_numbers<[1], [0], [0], [1], [0, 0, 1, 1], [], []>} : vector<8x16xbf16>, vector<16x128xbf16>, vector<8x128xf32> -> vector<8x128xf32>
    %c0_5 = arith.constant 0 : index
    %c0_6 = arith.constant 0 : index
    %6 = vector.load %arg3[%c0_5, %c0_6] : memref<3x128xf32, #tpu.memory_space<vmem>>, vector<1x128xf32>
    %7 = vector.broadcast %6 : vector<1x128xf32> to vector<8x128xf32>
    %8 = arith.addf %5, %7 : vector<8x128xf32>
    %cst_7 = arith.constant 0.000000e+00 : f32
    %9 = vector.broadcast %cst_7 : f32 to vector<8x128xf32>
    %10 = arith.maximumf %8, %9 : vector<8x128xf32>
    %11 = arith.truncf %10 : vector<8x128xf32> to vector<8x128xbf16>
    %cst_8 = arith.constant dense<0.000000e+00> : vector<8x128xf32>
    %12 = tpu.matmul %11, %3, %cst_8 {dimension_numbers = #tpu.dot_dimension_numbers<[1], [0], [0], [1], [0, 0, 1, 1], [], []>} : vector<8x128xbf16>, vector<128x128xbf16>, vector<8x128xf32> -> vector<8x128xf32>
    %c1 = arith.constant 1 : index
    %c0_9 = arith.constant 0 : index
    %13 = vector.load %arg3[%c1, %c0_9] : memref<3x128xf32, #tpu.memory_space<vmem>>, vector<1x128xf32>
    %14 = vector.broadcast %13 : vector<1x128xf32> to vector<8x128xf32>
    %15 = arith.addf %12, %14 : vector<8x128xf32>
    %cst_10 = arith.constant 0.000000e+00 : f32
    %16 = vector.broadcast %cst_10 : f32 to vector<8x128xf32>
    %17 = arith.maximumf %15, %16 : vector<8x128xf32>
    %18 = arith.truncf %17 : vector<8x128xf32> to vector<8x128xbf16>
    %cst_11 = arith.constant dense<0.000000e+00> : vector<8x128xf32>
    %19 = tpu.matmul %18, %4, %cst_11 {dimension_numbers = #tpu.dot_dimension_numbers<[1], [0], [0], [1], [0, 0, 1, 1], [], []>} : vector<8x128xbf16>, vector<128x128xbf16>, vector<8x128xf32> -> vector<8x128xf32>
    %c2 = arith.constant 2 : index
    %c0_12 = arith.constant 0 : index
    %20 = vector.load %arg3[%c2, %c0_12] : memref<3x128xf32, #tpu.memory_space<vmem>>, vector<1x128xf32>
    %21 = vector.broadcast %20 : vector<1x128xf32> to vector<8x128xf32>
    %22 = arith.addf %19, %21 : vector<8x128xf32>
    %cst_13 = arith.constant dense<0xFF800000> : vector<8xf32>
    %23 = vector.multi_reduction <maximumf>, %22, %cst_13 [1] : vector<8x128xf32> to vector<8xf32>
    %24 = vector.shape_cast %23 : vector<8xf32> to vector<8x1xf32>
    %25 = vector.broadcast %24 : vector<8x1xf32> to vector<8x128xf32>
    %26 = arith.subf %22, %25 : vector<8x128xf32>
    %27 = math.exp %26 : vector<8x128xf32>
    %cst_14 = arith.constant dense<0.000000e+00> : vector<8xf32>
    %28 = vector.multi_reduction <add>, %27, %cst_14 [1] : vector<8x128xf32> to vector<8xf32>
    %29 = vector.shape_cast %28 : vector<8xf32> to vector<8x1xf32>
    %30 = vector.extract_strided_slice %27 {offsets = [0, 0], sizes = [8, 4], strides = [1, 1]} : vector<8x128xf32> to vector<8x4xf32>
    %31 = vector.broadcast %29 : vector<8x1xf32> to vector<8x4xf32>
    %32 = arith.divf %30, %31 : vector<8x4xf32>
    %c0_15 = arith.constant 0 : index
    %c0_16 = arith.constant 0 : index
    %33 = vector.load %arg4[%c0_15, %c0_16] : memref<8x4xf32, #tpu.memory_space<vmem>>, vector<8x4xf32>
    tpu.vector_store %arg4[%c0_15, %c0_16], %32 {strides = array<i32>} : memref<8x4xf32, #tpu.memory_space<vmem>>, vector<8x4xf32>,
    return
  }
  func.func @transform_0(%arg0: i32) -> (i32, i32) {
    %c0_i32 = arith.constant 0 : i32
    %c0_i32_0 = arith.constant 0 : i32
    return %arg0, %c0_i32 : i32, i32
  }
  func.func @transform_1(%arg0: i32) -> (i32, i32) {
    %c0_i32 = arith.constant 0 : i32
    %c0_i32_0 = arith.constant 0 : i32
    %c0_i32_1 = arith.constant 0 : i32
    return %c0_i32, %c0_i32_0 : i32, i32
  }
  func.func @transform_2(%arg0: i32) -> (i32, i32) {
    %c0_i32 = arith.constant 0 : i32
    %c0_i32_0 = arith.constant 0 : i32
    %c0_i32_1 = arith.constant 0 : i32
    return %c0_i32, %c0_i32_0 : i32, i32
  }
  func.func @transform_3(%arg0: i32) -> (i32, i32) {
    %c0_i32 = arith.constant 0 : i32
    %c0_i32_0 = arith.constant 0 : i32
    return %arg0, %c0_i32 : i32, i32
  }
}

</mosaic_0001>

<llo_original>
// kernel: tpu_custom_call.1
$region0: #{tpu_custom_call.1}
  #allocation0 [shape = 'u32[]', space=smem, size = 0x4, offset = 0x4, fixed_abs, tag = 'smem constant byte address 0x4 - core index']
  #allocation1 [shape = 'u32[144,128]{1,0:T(1,128)}', space=vmem, size = 0x12000, scoped, tag = 'internal scratch']
  %s0 = inlined_call_operand.hbm [shape: f32[8,16], index: 0, kind: input, shape index: {}]
  %s1 = inlined_call_operand.hbm [shape: bf16[272,128], index: 1, kind: input, shape index: {}]
  %s2 = inlined_call_operand.vmem [shape: f32[3,128], index: 2, kind: input, shape index: {}]
  %s3 = inlined_call_operand.vmem [shape: f32[8,4], index: 3, kind: output, shape index: {}]
  %s4 = sld [smem:[#allocation0]]
  $region30: #{tpu_custom_call.1} parent=0
    _
  %s6 = ssub.s32 1, %s4
  %s7 = scalar_select 0, %s6, %s4
  $region1: #{tpu_custom_call.1} parent=0
    #allocation2 [shape = 'u8[4096]{0}', space=vmem, size = 0x1000, scoped, tag = 'input window, operand 0, single buffered']
    #allocation3 [shape = 's32[1]{0}', space=sflag, size = 0x4, scoped, tag = 'scoped memory for tpu_custom_call.1']
    #allocation4 [shape = 'u8[69632]{0}', space=vmem, size = 0x11000, scoped, tag = 'input window, operand 1, single buffered']
    #allocation5 [shape = 's32[1]{0}', space=sflag, size = 0x4, scoped, tag = 'scoped memory for tpu_custom_call.1']
    %8 = vsyncpa [#allocation3], 0
    %9 = vsyncpa [#allocation5], 0
    // Predicated region
    $region2: #{tpu_custom_call.1} parent=1 // pred_check
      _
    $region3: #{tpu_custom_call.1} parent=1 // pred_check_branch
      %11 = sbr.rel (0) target = $region5
    $region4: #{tpu_custom_call.1} parent=1 // pred_region
      %s13 = ssub.s32 128, 128
      %14 = vsyncadd [#allocation3], %s13
      %s16 = sshll.u32 [#allocation2], 4
      %s17 = int_to_ptr.vmem [resolvable:$true] %s16
      %19 = dma.hbm_to_vmem [thread:$0]  %s0, 128, %s17, [#allocation3]
    $region5: #{tpu_custom_call.1} parent=1 // pred_fallthru
      _
    // Predicated region
    $region6: #{tpu_custom_call.1} parent=1 // pred_check
      _
    $region7: #{tpu_custom_call.1} parent=1 // pred_check_branch
      %21 = sbr.rel (0) target = $region9
    $region8: #{tpu_custom_call.1} parent=1 // pred_region
      %s23 = ssub.s32 2176, 2176
      %24 = vsyncadd [#allocation5], %s23
      %s25 = sshll.u32 [#allocation4], 4
      %s26 = int_to_ptr.vmem [resolvable:$true] %s25
      %31 = dma.hbm_to_vmem [thread:$0]  %s1, 2176, %s26, [#allocation5], 64, 64, 4
    $region9: #{tpu_custom_call.1} parent=1 // pred_fallthru
      _
    // Predicated region
    $region10: #{tpu_custom_call.1} parent=1 // pred_check
      _
    $region11: #{tpu_custom_call.1} parent=1 // pred_check_branch
      %33 = sbr.rel (0) target = $region13
    $region12: #{tpu_custom_call.1} parent=1 // pred_region
      _
    $region13: #{tpu_custom_call.1} parent=1 // pred_fallthru
      _
    // Predicated region
    $region14: #{tpu_custom_call.1} parent=1 // pred_check
      _
    $region15: #{tpu_custom_call.1} parent=1 // pred_check_branch
      %35 = sbr.rel (0) target = $region17
    $region16: #{tpu_custom_call.1} parent=1 // pred_region
      %36 = dma.done [#allocation3], 128
    $region17: #{tpu_custom_call.1} parent=1 // pred_fallthru
      _
    // Predicated region
    $region18: #{tpu_custom_call.1} parent=1 // pred_check
      _
    $region19: #{tpu_custom_call.1} parent=1 // pred_check_branch
      %38 = sbr.rel (0) target = $region21
    $region20: #{tpu_custom_call.1} parent=1 // pred_region
      %39 = dma.done [#allocation5], 2176
    $region21: #{tpu_custom_call.1} parent=1 // pred_fallthru
      _
    %v41 = vld [vmem:[#allocation2] sm:$0xff]
    %v42 = vpack.c.bf16 %v41, %v41
    %v43 = vld [vmem:[#allocation4] sm:$0xf]
    %v44 = vld [vmem:[#allocation4 + $0x4] sm:$0xf]
    %v45 = vld [vmem:[#allocation4 + $0x8] sm:$0xf]
    %v46 = vld [vmem:[#allocation4 + $0xc] sm:$0xf]
    %v47 = vld [vmem:[#allocation4 + $0x10] sm:$0xf]
    %v48 = vld [vmem:[#allocation4 + $0x14] sm:$0xf]
    %v49 = vld [vmem:[#allocation4 + $0x18] sm:$0xf]
    %v50 = vld [vmem:[#allocation4 + $0x1c] sm:$0xf]
    %v51 = vld [vmem:[#allocation4 + $0x20] sm:$0xf]
    %v52 = vld [vmem:[#allocation4 + $0x24] sm:$0xf]
    %v53 = vld [vmem:[#allocation4 + $0x28] sm:$0xf]
    %v54 = vld [vmem:[#allocation4 + $0x2c] sm:$0xf]
    %v55 = vld [vmem:[#allocation4 + $0x30] sm:$0xf]
    %v56 = vld [vmem:[#allocation4 + $0x34] sm:$0xf]
    %v57 = vld [vmem:[#allocation4 + $0x38] sm:$0xf]
    %v58 = vld [vmem:[#allocation4 + $0x3c] sm:$0xf]
    %v59 = vld [vmem:[#allocation4 + $0x40] sm:$0xf]
    %v60 = vld [vmem:[#allocation4 + $0x44] sm:$0xf]
    %v61 = vld [vmem:[#allocation4 + $0x48] sm:$0xf]
    %v62 = vld [vmem:[#allocation4 + $0x4c] sm:$0xf]
    %v63 = vld [vmem:[#allocation4 + $0x50] sm:$0xf]
    %v64 = vld [vmem:[#allocation4 + $0x54] sm:$0xf]
    %v65 = vld [vmem:[#allocation4 + $0x58] sm:$0xf]
    %v66 = vld [vmem:[#allocation4 + $0x5c] sm:$0xf]
    %v67 = vld [vmem:[#allocation4 + $0x60] sm:$0xf]
    %v68 = vld [vmem:[#allocation4 + $0x64] sm:$0xf]
    %v69 = vld [vmem:[#allocation4 + $0x68] sm:$0xf]
    %v70 = vld [vmem:[#allocation4 + $0x6c] sm:$0xf]
    %v71 = vld [vmem:[#allocation4 + $0x70] sm:$0xf]
    %v72 = vld [vmem:[#allocation4 + $0x74] sm:$0xf]
    %v73 = vld [vmem:[#allocation4 + $0x78] sm:$0xf]
    %v74 = vld [vmem:[#allocation4 + $0x7c] sm:$0xf]
    %v75 = vld [vmem:[#allocation4 + $0x80] sm:$0xf]
    %v76 = vld [vmem:[#allocation4 + $0x84] sm:$0xf]
    %v77 = vld [vmem:[%s2] sm:$0x1]
    %v78 = vlaneseq
    %v79 = vshrl.u32 %v78, 7
    %v80 = vsub.s32 0, %v79
    %v81 = vrot.slane %v77, %v80
    %v84 = vunpack.c.l.b16 %v43
    %v85 = vunpack.c.l.b16 %v44
    %v86 = vpack.c.b16 %v85, %v84
    %vm88 = vcmask 130048
    %v90 = vsel %vm88, %v42, 0
    %92 = vmatprep.subr.bf16.mxu0 0
    %93 = vmatpush1.bf16.msra.mxu0 %v86
    %94 = vmatprep.subr.bf16.mxu0 0
    %95 = vmatpush1.bf16.msra.mxu0 0
    %96 = vmatprep.subr.bf16.mxu0 0
    %97 = vmatpush1.bf16.msra.mxu0 0
    %98 = vmatprep.subr.bf16.mxu0 0
    %99 = vmatpush1.bf16.msra.mxu0 0
    %100 = vmatprep.subr.bf16.mxu0 0
    %101 = vmatpush1.bf16.msra.mxu0 0
    %102 = vmatprep.subr.bf16.mxu0 0
    %103 = vmatpush1.bf16.msra.mxu0 0
    %104 = vmatprep.subr.bf16.mxu0 0
    %105 = vmatpush1.bf16.msra.mxu0 0
    %106 = vmatprep.subr.bf16.mxu0 0
    %107 = vmatpush1.bf16.msra.mxu0 0
    %108 = vmatprep.subr.bf16.mxu0 0
    %109 = vmatpush1.bf16.msra.mxu0 0
    %110 = vmatprep.subr.bf16.mxu0 0
    %111 = vmatpush1.bf16.msra.mxu0 0
    %112 = vmatprep.subr.bf16.mxu0 0
    %113 = vmatpush1.bf16.msra.mxu0 0
    %114 = vmatprep.subr.bf16.mxu0 0
    %115 = vmatpush1.bf16.msra.mxu0 0
    %116 = vmatprep.subr.bf16.mxu0 0
    %117 = vmatpush1.bf16.msra.mxu0 0
    %118 = vmatprep.subr.bf16.mxu0 0
    %119 = vmatpush1.bf16.msra.mxu0 0
    %120 = vmatprep.subr.bf16.mxu0 0
    %121 = vmatpush1.bf16.msra.mxu0 0
    %122 = vmatprep.subr.bf16.mxu0 0
    %123 = vmatpush1.bf16.msra.mxu0 0
    %124 = vmatprep.mubr.bf16.mxu0 0
    %125 = vmatmul.mubr.bf16.gmra.mrb[0].mxu0 %v90
    %v126 = vpop.f32.mrb[0].mxu0
    %v127 = vadd.f32 %v81, %v126
    %v128 = vpop.f32.mrb[0].mxu0
    %v129 = vpop.f32.mrb[0].mxu0
    %v130 = vpop.f32.mrb[0].mxu0
    %131 = vdwg.mxu0
    %v132 = vmax.f32 %v127, 0.0
    %v133 = vpack.c.bf16 %v132, %v132
    %v134 = vld [vmem:[%s2 + $0x1] sm:$0x1]
    %v135 = vlaneseq
    %v136 = vshrl.u32 %v135, 7
    %v137 = vsub.s32 0, %v136
    %v138 = vrot.slane %v134, %v137
    %v155 = vunpack.c.l.b16 %v45
    %v156 = vunpack.c.l.b16 %v46
    %v157 = vunpack.c.l.b16 %v47
    %v158 = vunpack.c.l.b16 %v48
    %v159 = vunpack.c.l.b16 %v49
    %v160 = vunpack.c.l.b16 %v50
    %v161 = vunpack.c.l.b16 %v51
    %v162 = vunpack.c.l.b16 %v52
    %v163 = vunpack.c.l.b16 %v53
    %v164 = vunpack.c.l.b16 %v54
    %v165 = vunpack.c.l.b16 %v55
    %v166 = vunpack.c.l.b16 %v56
    %v167 = vunpack.c.l.b16 %v57
    %v168 = vunpack.c.l.b16 %v58
    %v169 = vunpack.c.l.b16 %v59
    %v170 = vunpack.c.l.b16 %v60
    %v171 = vpack.c.b16 %v156, %v155
    %v172 = vpack.c.b16 %v158, %v157
    %v173 = vpack.c.b16 %v160, %v159
    %v174 = vpack.c.b16 %v162, %v161
    %v175 = vpack.c.b16 %v164, %v163
    %v176 = vpack.c.b16 %v166, %v165
    %v177 = vpack.c.b16 %v168, %v167
    %v178 = vpack.c.b16 %v170, %v169
    %187 = vmatprep.subr.bf16.mxu0 0
    %188 = vmatpush1.bf16.msra.mxu0 %v171
    %189 = vmatprep.subr.bf16.mxu0 0
    %190 = vmatpush1.bf16.msra.mxu0 %v172
    %191 = vmatprep.subr.bf16.mxu0 0
    %192 = vmatpush1.bf16.msra.mxu0 %v173
    %193 = vmatprep.subr.bf16.mxu0 0
    %194 = vmatpush1.bf16.msra.mxu0 %v174
    %195 = vmatprep.subr.bf16.mxu0 0
    %196 = vmatpush1.bf16.msra.mxu0 %v175
    %197 = vmatprep.subr.bf16.mxu0 0
    %198 = vmatpush1.bf16.msra.mxu0 %v176
    %199 = vmatprep.subr.bf16.mxu0 0
    %200 = vmatpush1.bf16.msra.mxu0 %v177
    %201 = vmatprep.subr.bf16.mxu0 0
    %202 = vmatpush1.bf16.msra.mxu0 %v178
    %203 = vmatprep.subr.bf16.mxu0 0
    %204 = vmatpush1.bf16.msra.mxu0 0
    %205 = vmatprep.subr.bf16.mxu0 0
    %206 = vmatpush1.bf16.msra.mxu0 0
    %207 = vmatprep.subr.bf16.mxu0 0
    %208 = vmatpush1.bf16.msra.mxu0 0
    %209 = vmatprep.subr.bf16.mxu0 0
    %210 = vmatpush1.bf16.msra.mxu0 0
    %211 = vmatprep.subr.bf16.mxu0 0
    %212 = vmatpush1.bf16.msra.mxu0 0
    %213 = vmatprep.subr.bf16.mxu0 0
    %214 = vmatpush1.bf16.msra.mxu0 0
    %215 = vmatprep.subr.bf16.mxu0 0
    %216 = vmatpush1.bf16.msra.mxu0 0
    %217 = vmatprep.subr.bf16.mxu0 0
    %218 = vmatpush1.bf16.msra.mxu0 0
    %219 = vmatprep.mubr.bf16.mxu0 0
    %220 = vmatmul.mubr.bf16.gmra.mrb[0].mxu0 %v133
    %v221 = vpop.f32.mrb[0].mxu0
    %v222 = vadd.f32 %v138, %v221
    %v223 = vpop.f32.mrb[0].mxu0
    %v224 = vpop.f32.mrb[0].mxu0
    %v225 = vpop.f32.mrb[0].mxu0
    %226 = vdwg.mxu0
    %v227 = vmax.f32 %v222, 0.0
    %v228 = vpack.c.bf16 %v227, %v227
    %v229 = vld [vmem:[%s2 + $0x2] sm:$0x1]
    %v230 = vlaneseq
    %v231 = vshrl.u32 %v230, 7
    %v232 = vsub.s32 0, %v231
    %v233 = vrot.slane %v229, %v232
    %v250 = vunpack.c.l.b16 %v61
    %v251 = vunpack.c.l.b16 %v62
    %v252 = vunpack.c.l.b16 %v63
    %v253 = vunpack.c.l.b16 %v64
    %v254 = vunpack.c.l.b16 %v65
    %v255 = vunpack.c.l.b16 %v66
    %v256 = vunpack.c.l.b16 %v67
    %v257 = vunpack.c.l.b16 %v68
    %v258 = vunpack.c.l.b16 %v69
    %v259 = vunpack.c.l.b16 %v70
    %v260 = vunpack.c.l.b16 %v71
    %v261 = vunpack.c.l.b16 %v72
    %v262 = vunpack.c.l.b16 %v73
    %v263 = vunpack.c.l.b16 %v74
    %v264 = vunpack.c.l.b16 %v75
    %v265 = vunpack.c.l.b16 %v76
    %v266 = vpack.c.b16 %v251, %v250
    %v267 = vpack.c.b16 %v253, %v252
    %v268 = vpack.c.b16 %v255, %v254
    %v269 = vpack.c.b16 %v257, %v256
    %v270 = vpack.c.b16 %v259, %v258
    %v271 = vpack.c.b16 %v261, %v260
    %v272 = vpack.c.b16 %v263, %v262
    %v273 = vpack.c.b16 %v265, %v264
    %282 = vmatprep.subr.bf16.mxu0 0
    %283 = vmatpush1.bf16.msra.mxu0 %v266
    %284 = vmatprep.subr.bf16.mxu0 0
    %285 = vmatpush1.bf16.msra.mxu0 %v267
    %286 = vmatprep.subr.bf16.mxu0 0
    %287 = vmatpush1.bf16.msra.mxu0 %v268
    %288 = vmatprep.subr.bf16.mxu0 0
    %289 = vmatpush1.bf16.msra.mxu0 %v269
    %290 = vmatprep.subr.bf16.mxu0 0
    %291 = vmatpush1.bf16.msra.mxu0 %v270
    %292 = vmatprep.subr.bf16.mxu0 0
    %293 = vmatpush1.bf16.msra.mxu0 %v271
    %294 = vmatprep.subr.bf16.mxu0 0
    %295 = vmatpush1.bf16.msra.mxu0 %v272
    %296 = vmatprep.subr.bf16.mxu0 0
    %297 = vmatpush1.bf16.msra.mxu0 %v273
    %298 = vmatprep.subr.bf16.mxu0 0
    %299 = vmatpush1.bf16.msra.mxu0 0
    %300 = vmatprep.subr.bf16.mxu0 0
    %301 = vmatpush1.bf16.msra.mxu0 0
    %302 = vmatprep.subr.bf16.mxu0 0
    %303 = vmatpush1.bf16.msra.mxu0 0
    %304 = vmatprep.subr.bf16.mxu0 0
    %305 = vmatpush1.bf16.msra.mxu0 0
    %306 = vmatprep.subr.bf16.mxu0 0
    %307 = vmatpush1.bf16.msra.mxu0 0
    %308 = vmatprep.subr.bf16.mxu0 0
    %309 = vmatpush1.bf16.msra.mxu0 0
    %310 = vmatprep.subr.bf16.mxu0 0
    %311 = vmatpush1.bf16.msra.mxu0 0
    %312 = vmatprep.subr.bf16.mxu0 0
    %313 = vmatpush1.bf16.msra.mxu0 0
    %314 = vmatprep.mubr.bf16.mxu0 0
    %315 = vmatmul.mubr.bf16.gmra.mrb[0].mxu0 %v228
    %v316 = vpop.f32.mrb[0].mxu0
    %v317 = vadd.f32 %v233, %v316
    %v318 = vpop.f32.mrb[0].mxu0
    %v319 = vpop.f32.mrb[0].mxu0
    %v320 = vpop.f32.mrb[0].mxu0
    %321 = vdwg.mxu0
    %322 = vmax.xlane.f32.xlu0 %v317
    %v323 = vpop.xlane.xlu0 %322
    %v324 = vsub.f32 %v317, %v323
    %v325 = vmul.f32 %v324, 1.442695
    %v326 = vpow.pop %v325
    %327 = vadd.xlane.f32.xlu0 %v326
    %v328 = vpop.xlane.xlu0 %327
    %v329 = vrcp.pop %v328
    %v330 = vmul.f32 %v326, %v329
    %vm331 = vcmask 31744
    %332 = vst.msk [vmem:[%s3] sm:$0xff] %vm331, %v330
    // Predicated region
    $region22: #{tpu_custom_call.1} parent=1 // pred_check
      _
    $region23: #{tpu_custom_call.1} parent=1 // pred_check_branch
      %334 = sbr.rel (0) target = $region25
    $region24: #{tpu_custom_call.1} parent=1 // pred_region
      _
    $region25: #{tpu_custom_call.1} parent=1 // pred_fallthru
      _
    // Predicated region
    $region26: #{tpu_custom_call.1} parent=1 // pred_check
      _
    $region27: #{tpu_custom_call.1} parent=1 // pred_check_branch
      %336 = sbr.rel (0) target = $region29
    $region28: #{tpu_custom_call.1} parent=1 // pred_region
      _
    $region29: #{tpu_custom_call.1} parent=1 // pred_fallthru
      _
    %337 = vsyncpa [#allocation3], 1
    %338 = vsyncpa [#allocation5], 1

</llo_original>
